<compile_context>
chip_gen: v6e
topology: v6e:2x2x1
jax: 0.10.0
libtpu: 0.0.40
codegen_flags: <defaults>
</compile_context>

<pallas_src>
import jax
import jax.numpy as jnp
from jax.experimental import pallas as pl
from jax.experimental.pallas import tpu as pltpu

_LANES = 128


def _make_get_alpha_kernel(inv_hw, hw_valid, chunk_rows, has_pad):
    neg_inf = float("-inf")

    def kernel(x_ref, w1t_ref, w2_ref, o_ref, sum_acc, max_acc):
        # x_ref  : (1, C, TN, 128)  lane-dense chunk of one batch element
        # w1t_ref: (C, M)           fc1 weight, transposed to (in, out)
        # w2_ref : (1, M)           fc2 weight
        # o_ref  : (1, 1, 1)        sigmoid(alpha) for this batch element
        # sum_acc, max_acc : (C, 128) f32 running reductions across chunks
        s = pl.program_id(1)

        @pl.when(s == 0)
        def _init():
            sum_acc[...] = jnp.zeros_like(sum_acc)
            max_acc[...] = jnp.full_like(max_acc, neg_inf)

        x = x_ref[0].astype(jnp.float32)                    # (C, TN, 128)

        if has_pad:
            # Zero padding is neutral for the sum; mask it out for the max.
            row = jax.lax.broadcasted_iota(jnp.int32, (x.shape[1], _LANES), 0)
            lane = jax.lax.broadcasted_iota(jnp.int32, (x.shape[1], _LANES), 1)
            flat = (s * chunk_rows + row) * _LANES + lane
            valid = flat < hw_valid
            x_max = jnp.where(valid[None, :, :], x, neg_inf)
        else:
            x_max = x

        # Row-axis (VPU-dominated) partial reductions, accumulated lane-wide.
        sum_acc[...] = sum_acc[...] + jnp.sum(x, axis=1)            # (C, 128)
        max_acc[...] = jnp.maximum(max_acc[...], jnp.max(x_max, axis=1))

        @pl.when(s == pl.num_programs(1) - 1)
        def _finalize():
            # One cross-lane (XLU) reduce per batch element.
            avg_c = jnp.sum(sum_acc[...], axis=1, keepdims=True) * inv_hw  # (C, 1)
            max_c = jnp.max(max_acc[...], axis=1, keepdims=True)           # (C, 1)
            w1t = w1t_ref[...]                                             # (C, M)
            w2 = w2_ref[...]                                               # (1, M)

            # fc1 + ReLU on the VPU: broadcast pooled (C,1) over M lanes,
            # multiply, reduce over the C axis -> (1, M).
            h_avg = jnp.maximum(jnp.sum(w1t * avg_c, axis=0, keepdims=True), 0.0)
            h_max = jnp.maximum(jnp.sum(w1t * max_c, axis=0, keepdims=True), 0.0)

            # fc2: lane reduce against the (1, M) weight row -> (1, 1).
            logit = (jnp.sum(h_avg * w2, axis=1, keepdims=True) +
                     jnp.sum(h_max * w2, axis=1, keepdims=True))

            o_ref[...] = jax.nn.sigmoid(logit).reshape(1, 1, 1)

    return kernel


def _pick_chunk_rows(n_total, C, itemsize, budget_bytes, sublane_mult):
    """Pick a divisor of n_total (multiple of sublane_mult, or the full axis)
    whose (1, C, TN, 128) block fits the byte budget."""
    full_bytes = C * n_total * _LANES * itemsize
    if full_bytes <= budget_bytes:
        return n_total
    for mult in (sublane_mult, 8):
        for cand in range(n_total, 0, -1):
            if n_total % cand or cand % mult:
                continue
            if C * cand * _LANES * itemsize <= budget_bytes:
                return cand
    return n_total  # correct but large; scoped VMEM limit is raised accordingly


def get_alpha_forward(x_nchw, w_fc1, w_fc2, *, chunk_rows=None):
    """x_nchw: (B, C, H, W); w_fc1: (M, C, 1, 1); w_fc2: (1, M, 1, 1) -> (B, 1, 1, 1)."""
    B, C, H, W = x_nchw.shape
    M = w_fc1.shape[0]
    HW = H * W

    # Flatten spatial onto lanes (free reshape for contiguous NCHW). Only pad
    # (with zeros) when HW is not a multiple of 128; max() is masked in-kernel.
    HWp = ((HW + _LANES - 1) // _LANES) * _LANES
    has_pad = HWp != HW
    x_flat = x_nchw.reshape(B, C, HW)
    if has_pad:
        x_flat = jnp.pad(x_flat, ((0, 0), (0, 0), (0, HWp - HW)))
    n_total = HWp // _LANES
    x_lanes = x_flat.reshape(B, C, n_total, _LANES)      # native dtype, no f32 cast

    w1t = jnp.transpose(w_fc1.reshape(M, C), (1, 0)).astype(jnp.float32)   # (C, M)
    w2 = w_fc2.reshape(1, M).astype(jnp.float32)                           # (1, M)

    itemsize = jnp.dtype(x_nchw.dtype).itemsize
    # Generation-aware VMEM budgeting (v7x has only 64 MiB of physical VMEM).
    try:
        vmem_cap = int(pltpu.get_tpu_info().vmem_capacity_bytes)
    except Exception:
        vmem_cap = 64 * 1024 * 1024
    scoped_cap = (vmem_cap * 3) // 4                      # leave headroom
    block_budget = min(12 << 20, scoped_cap // 4)

    # Sublane packing: f32 -> 8, bf16 -> 16, int8/fp8 -> 32.
    sublane_mult = 8 * max(1, 4 // max(1, itemsize))

    if chunk_rows is None:
        chunk_rows = _pick_chunk_rows(n_total, C, itemsize, block_budget, sublane_mult)
    assert n_total % chunk_rows == 0, "chunk_rows must divide HW/128"
    n_chunks = n_total // chunk_rows

    block_bytes = C * chunk_rows * _LANES * itemsize
    vmem_limit = int(min(scoped_cap, max(16 << 20, 4 * block_bytes + (2 << 20))))

    kernel = _make_get_alpha_kernel(1.0 / float(HW), HW, chunk_rows, has_pad)

    x_index_map = lambda b, s: (b, 0, s, 0)
    x_spec = pl.BlockSpec((1, C, chunk_rows, _LANES), x_index_map)
    if n_chunks >= 3 and block_bytes <= (2 << 20):
        # Small, short-lived blocks: deepen input prefetch to hide DMA latency.
        try:
            x_spec = pl.BlockSpec((1, C, chunk_rows, _LANES), x_index_map,
                                  pipeline_mode=pl.Buffered(3))
        except TypeError:
            pass

    out = pl.pallas_call(
        kernel,
        out_shape=jax.ShapeDtypeStruct((B, 1, 1), jnp.float32),
        grid_spec=pltpu.PrefetchScalarGridSpec(
            num_scalar_prefetch=0,
            grid=(B, n_chunks),
            in_specs=[
                x_spec,
                pl.BlockSpec((C, M), lambda b, s: (0, 0)),
                pl.BlockSpec((1, M), lambda b, s: (0, 0)),
            ],
            out_specs=pl.BlockSpec((1, 1, 1), lambda b, s: (b, 0, 0)),
            scratch_shapes=[pltpu.VMEM((C, _LANES), jnp.float32),
                            pltpu.VMEM((C, _LANES), jnp.float32)],
        ),
        compiler_params=pltpu.CompilerParams(
            dimension_semantics=("parallel", "arbitrary"),
            vmem_limit_bytes=vmem_limit),
    )(x_lanes, w1t, w2)

    return out.reshape(B, 1, 1, 1)


def get_alpha_reference(x, w_fc1, w_fc2):
    """Pure-JAX reference matching the PyTorch getAlpha module (1x1 convs == matmuls)."""
    B, C, H, W = x.shape
    M = w_fc1.shape[0]
    xf = x.astype(jnp.float32)
    avg = jnp.mean(xf, axis=(2, 3))                      # (B, C)
    mx = jnp.max(xf, axis=(2, 3))                        # (B, C)
    w1 = w_fc1.reshape(M, C).astype(jnp.float32)         # (M, C)
    w2 = w_fc2.reshape(1, M).astype(jnp.float32)         # (1, M)

    def mlp(p):
        h = jnp.maximum(p @ w1.T, 0.0)                   # (B, M)
        return h @ w2.T                                  # (B, 1)

    return jax.nn.sigmoid(mlp(avg) + mlp(mx)).reshape(B, 1, 1, 1)


if __name__ == "__main__":
    in_channels = 4
    B, C = 2, 2 * in_channels                            # x has 2*in_channels channels
    M = in_channels

    key = jax.random.PRNGKey(0)
    kx, k1, k2, kx2 = jax.random.split(key, 4)

    # PyTorch-default-like uniform init for 1x1 convs (no biases in this module).
    bound1 = 1.0 / (C * 1 * 1) ** 0.5
    w_fc1 = jax.random.uniform(k1, (M, C, 1, 1), jnp.float32, -bound1, bound1)
    bound2 = 1.0 / (M * 1 * 1) ** 0.5
    w_fc2 = jax.random.uniform(k2, (1, M, 1, 1), jnp.float32, -bound2, bound2)

    # --- primary config: (2, 8, 16, 16), f32, single lane-dense chunk ---------
    H, W = 16, 16
    x = jax.random.normal(kx, (B, C, H, W), dtype=jnp.float32)
    y = jax.block_until_ready(get_alpha_forward(x, w_fc1, w_fc2))
    y_ref = get_alpha_reference(x, w_fc1, w_fc2)
    assert y.shape == (B, 1, 1, 1)
    assert jnp.allclose(y, y_ref, atol=1e-5, rtol=1e-5), "mismatch (f32, single chunk)"

    # --- multi-chunk config: exercises the running sum/max accumulators ------
    H2, W2 = 48, 64                                      # HW = 3072 -> 24 lane rows, 3 chunks of 8
    x2 = jax.random.normal(kx2, (B, C, H2, W2), dtype=jnp.float32)
    y2 = jax.block_until_ready(get_alpha_forward(x2, w_fc1, w_fc2, chunk_rows=8))
    y2_ref = get_alpha_reference(x2, w_fc1, w_fc2)
    assert jnp.allclose(y2, y2_ref, atol=1e-5, rtol=1e-5), "mismatch (f32, multi chunk)"

    # --- bf16 input streamed natively (no wrapper-side f32 cast) --------------
    x_bf16 = x.astype(jnp.bfloat16)
    y_bf = jax.block_until_ready(get_alpha_forward(x_bf16, w_fc1, w_fc2))
    y_bf_ref = get_alpha_reference(x_bf16.astype(jnp.float32), w_fc1, w_fc2)
    assert jnp.allclose(y_bf, y_bf_ref, atol=1e-4, rtol=1e-4), "mismatch (bf16)"

    print("KERNEL_OK")
</pallas_src>

<mosaic_0001>
module attributes {stable_mosaic.version = 11 : i64} {
  func.func @kernel(%arg0: i32, %arg1: i32, %arg2: memref<1x8x2x128xf32, #tpu.memory_space<vmem>>, %arg3: memref<8x4xf32, #tpu.memory_space<vmem>>, %arg4: memref<1x4xf32, #tpu.memory_space<vmem>>, %arg5: memref<1x1x1xf32, #tpu.memory_space<vmem>>, %arg6: memref<8x128xf32, #tpu.memory_space<vmem>>, %arg7: memref<8x128xf32, #tpu.memory_space<vmem>>) attributes {dimension_semantics = [#tpu.dimension_semantics<parallel>, #tpu.dimension_semantics<arbitrary>], iteration_bounds = array<i64: 2, 1>, scalar_prefetch = 0 : i64, scratch_operands = 2 : i64, tpu.core_type = #tpu.core_type<tc>, window_params = [{transform_indices = @transform_0, window_bounds = array<i64: 1, 8, 2, 128>}, {pipeline_mode = #tpu.pipeline_mode<synchronous>, transform_indices = @transform_1, window_bounds = array<i64: 8, 4>}, {pipeline_mode = #tpu.pipeline_mode<synchronous>, transform_indices = @transform_2, window_bounds = array<i64: 1, 4>}, {transform_indices = @transform_3, window_bounds = array<i64: 1, 1, 1>}]} {
    %c0_i32 = arith.constant 0 : i32
    %0 = arith.cmpi eq, %arg1, %c0_i32 : i32
    %1 = arith.extui %0 : i1 to i32
    %c0_i32_0 = arith.constant 0 : i32
    %2 = arith.cmpi ne, %1, %c0_i32_0 : i32
    scf.if %2 {
      %cst_15 = arith.constant 0.000000e+00 : f32
      %16 = vector.broadcast %cst_15 : f32 to vector<8x128xf32>
      %c0_16 = arith.constant 0 : index
      %c0_17 = arith.constant 0 : index
      %17 = vector.load %arg6[%c0_16, %c0_17] : memref<8x128xf32, #tpu.memory_space<vmem>>, vector<8x128xf32>
      tpu.vector_store %arg6[%c0_16, %c0_17], %16 {strides = array<i32>} : memref<8x128xf32, #tpu.memory_space<vmem>>, vector<8x128xf32>,
      %cst_18 = arith.constant 0xFF800000 : f32
      %18 = vector.broadcast %cst_18 : f32 to vector<8x128xf32>
      %c0_19 = arith.constant 0 : index
      %c0_20 = arith.constant 0 : index
      %19 = vector.load %arg7[%c0_19, %c0_20] : memref<8x128xf32, #tpu.memory_space<vmem>>, vector<8x128xf32>
      tpu.vector_store %arg7[%c0_19, %c0_20], %18 {strides = array<i32>} : memref<8x128xf32, #tpu.memory_space<vmem>>, vector<8x128xf32>,
    } else {
    }
    %c0 = arith.constant 0 : index
    %c0_1 = arith.constant 0 : index
    %c0_2 = arith.constant 0 : index
    %c0_3 = arith.constant 0 : index
    %3 = vector.load %arg2[%c0, %c0_1, %c0_2, %c0_3] : memref<1x8x2x128xf32, #tpu.memory_space<vmem>>, vector<1x8x2x128xf32>
    %4 = vector.shape_cast %3 : vector<1x8x2x128xf32> to vector<8x2x128xf32>
    %c0_4 = arith.constant 0 : index
    %c0_5 = arith.constant 0 : index
    %5 = vector.load %arg6[%c0_4, %c0_5] : memref<8x128xf32, #tpu.memory_space<vmem>>, vector<8x128xf32>
    %cst = arith.constant dense<0.000000e+00> : vector<8x128xf32>
    %6 = vector.multi_reduction <add>, %4, %cst [1] : vector<8x2x128xf32> to vector<8x128xf32>
    %7 = arith.addf %5, %6 : vector<8x128xf32>
    %c0_6 = arith.constant 0 : index
    %c0_7 = arith.constant 0 : index
    %8 = vector.load %arg6[%c0_6, %c0_7] : memref<8x128xf32, #tpu.memory_space<vmem>>, vector<8x128xf32>
    tpu.vector_store %arg6[%c0_6, %c0_7], %7 {strides = array<i32>} : memref<8x128xf32, #tpu.memory_space<vmem>>, vector<8x128xf32>,
    %c0_8 = arith.constant 0 : index
    %c0_9 = arith.constant 0 : index
    %9 = vector.load %arg7[%c0_8, %c0_9] : memref<8x128xf32, #tpu.memory_space<vmem>>, vector<8x128xf32>
    %cst_10 = arith.constant dense<0xFF800000> : vector<8x128xf32>
    %10 = vector.multi_reduction <maximumf>, %4, %cst_10 [1] : vector<8x2x128xf32> to vector<8x128xf32>
    %11 = arith.maximumf %9, %10 : vector<8x128xf32>
    %c0_11 = arith.constant 0 : index
    %c0_12 = arith.constant 0 : index
    %12 = vector.load %arg7[%c0_11, %c0_12] : memref<8x128xf32, #tpu.memory_space<vmem>>, vector<8x128xf32>
    tpu.vector_store %arg7[%c0_11, %c0_12], %11 {strides = array<i32>} : memref<8x128xf32, #tpu.memory_space<vmem>>, vector<8x128xf32>,
    %c0_i32_13 = arith.constant 0 : i32
    %13 = arith.cmpi eq, %arg1, %c0_i32_13 : i32
    %14 = arith.extui %13 : i1 to i32
    %c0_i32_14 = arith.constant 0 : i32
    %15 = arith.cmpi ne, %14, %c0_i32_14 : i32
    scf.if %15 {
      %c0_15 = arith.constant 0 : index
      %c0_16 = arith.constant 0 : index
      %16 = vector.load %arg6[%c0_15, %c0_16] : memref<8x128xf32, #tpu.memory_space<vmem>>, vector<8x128xf32>
      %cst_17 = arith.constant dense<0.000000e+00> : vector<8xf32>
      %17 = vector.multi_reduction <add>, %16, %cst_17 [1] : vector<8x128xf32> to vector<8xf32>
      %18 = vector.shape_cast %17 : vector<8xf32> to vector<8x1xf32>
      %cst_18 = arith.constant 3.906250e-03 : f32
      %19 = vector.broadcast %cst_18 : f32 to vector<8x1xf32>
      %20 = arith.mulf %18, %19 : vector<8x1xf32>
      %c0_19 = arith.constant 0 : index
      %c0_20 = arith.constant 0 : index
      %21 = vector.load %arg7[%c0_19, %c0_20] : memref<8x128xf32, #tpu.memory_space<vmem>>, vector<8x128xf32>
      %cst_21 = arith.constant dense<0xFF800000> : vector<8xf32>
      %22 = vector.multi_reduction <maximumf>, %21, %cst_21 [1] : vector<8x128xf32> to vector<8xf32>
      %23 = vector.shape_cast %22 : vector<8xf32> to vector<8x1xf32>
      %c0_22 = arith.constant 0 : index
      %c0_23 = arith.constant 0 : index
      %24 = vector.load %arg3[%c0_22, %c0_23] : memref<8x4xf32, #tpu.memory_space<vmem>>, vector<8x4xf32>
      %c0_24 = arith.constant 0 : index
      %c0_25 = arith.constant 0 : index
      %25 = vector.load %arg4[%c0_24, %c0_25] : memref<1x4xf32, #tpu.memory_space<vmem>>, vector<1x4xf32>
      %26 = vector.broadcast %20 : vector<8x1xf32> to vector<8x4xf32>
      %27 = arith.mulf %24, %26 : vector<8x4xf32>
      %cst_26 = arith.constant dense<0.000000e+00> : vector<4xf32>
      %28 = vector.multi_reduction <add>, %27, %cst_26 [0] : vector<8x4xf32> to vector<4xf32>
      %29 = vector.shape_cast %28 : vector<4xf32> to vector<1x4xf32>
      %cst_27 = arith.constant 0.000000e+00 : f32
      %30 = vector.broadcast %cst_27 : f32 to vector<1x4xf32>
      %31 = arith.maximumf %29, %30 : vector<1x4xf32>
      %32 = vector.broadcast %23 : vector<8x1xf32> to vector<8x4xf32>
      %33 = arith.mulf %24, %32 : vector<8x4xf32>
      %cst_28 = arith.constant dense<0.000000e+00> : vector<4xf32>
      %34 = vector.multi_reduction <add>, %33, %cst_28 [0] : vector<8x4xf32> to vector<4xf32>
      %35 = vector.shape_cast %34 : vector<4xf32> to vector<1x4xf32>
      %cst_29 = arith.constant 0.000000e+00 : f32
      %36 = vector.broadcast %cst_29 : f32 to vector<1x4xf32>
      %37 = arith.maximumf %35, %36 : vector<1x4xf32>
      %38 = arith.mulf %31, %25 : vector<1x4xf32>
      %cst_30 = arith.constant dense<0.000000e+00> : vector<1xf32>
      %39 = vector.multi_reduction <add>, %38, %cst_30 [1] : vector<1x4xf32> to vector<1xf32>
      %40 = vector.shape_cast %39 : vector<1xf32> to vector<1x1xf32>
      %41 = arith.mulf %37, %25 : vector<1x4xf32>
      %cst_31 = arith.constant dense<0.000000e+00> : vector<1xf32>
      %42 = vector.multi_reduction <add>, %41, %cst_31 [1] : vector<1x4xf32> to vector<1xf32>
      %43 = vector.shape_cast %42 : vector<1xf32> to vector<1x1xf32>
      %44 = arith.addf %40, %43 : vector<1x1xf32>
      %45 = arith.negf %44 : vector<1x1xf32>
      %46 = math.exp %45 : vector<1x1xf32>
      %cst_32 = arith.constant 1.000000e+00 : f32
      %47 = vector.broadcast %cst_32 : f32 to vector<1x1xf32>
      %48 = arith.addf %47, %46 : vector<1x1xf32>
      %49 = arith.divf %47, %48 : vector<1x1xf32>
      %50 = vector.shape_cast %49 : vector<1x1xf32> to vector<1x1x1xf32>
      %c0_33 = arith.constant 0 : index
      %c0_34 = arith.constant 0 : index
      %c0_35 = arith.constant 0 : index
      %51 = vector.load %arg5[%c0_33, %c0_34, %c0_35] : memref<1x1x1xf32, #tpu.memory_space<vmem>>, vector<1x1x1xf32>
      tpu.vector_store %arg5[%c0_33, %c0_34, %c0_35], %50 {strides = array<i32>} : memref<1x1x1xf32, #tpu.memory_space<vmem>>, vector<1x1x1xf32>,
    } else {
    }
    return
  }
  func.func @transform_0(%arg0: i32, %arg1: i32) -> (i32, i32, i32, i32) {
    %c0_i32 = arith.constant 0 : i32
    %c0_i32_0 = arith.constant 0 : i32
    %c0_i32_1 = arith.constant 0 : i32
    return %arg0, %c0_i32, %arg1, %c0_i32_0 : i32, i32, i32, i32
  }
  func.func @transform_1(%arg0: i32, %arg1: i32) -> (i32, i32) {
    %c0_i32 = arith.constant 0 : i32
    %c0_i32_0 = arith.constant 0 : i32
    %c0_i32_1 = arith.constant 0 : i32
    return %c0_i32, %c0_i32_0 : i32, i32
  }
  func.func @transform_2(%arg0: i32, %arg1: i32) -> (i32, i32) {
    %c0_i32 = arith.constant 0 : i32
    %c0_i32_0 = arith.constant 0 : i32
    %c0_i32_1 = arith.constant 0 : i32
    return %c0_i32, %c0_i32_0 : i32, i32
  }
  func.func @transform_3(%arg0: i32, %arg1: i32) -> (i32, i32, i32) {
    %c0_i32 = arith.constant 0 : i32
    %c0_i32_0 = arith.constant 0 : i32
    %c0_i32_1 = arith.constant 0 : i32
    return %arg0, %c0_i32, %c0_i32_0 : i32, i32, i32
  }
}

</mosaic_0001>

<llo_original>
// kernel: tpu_custom_call.1
$region0: #{tpu_custom_call.1}
  #allocation0 [shape = 'u32[]', space=smem, size = 0x4, offset = 0x4, fixed_abs, tag = 'smem constant byte address 0x4 - core index']
  #allocation1 [shape = 'u32[144,128]{1,0:T(1,128)}', space=vmem, size = 0x12000, scoped, tag = 'internal scratch']
  #allocation2 [shape = 'f32[8,128]{1,0:T(8,128)}', space=vmem, size = 0x1000, scoped, tag = 'scratch operand']
  #allocation3 [shape = 'f32[8,128]{1,0:T(8,128)}', space=vmem, size = 0x1000, scoped, tag = 'scratch operand']
  %s0 = inlined_call_operand.hbm [shape: f32[2,8,2,128], index: 0, kind: input, shape index: {}]
  %s1 = inlined_call_operand.vmem [shape: f32[8,4], index: 1, kind: input, shape index: {}]
  %s2 = inlined_call_operand.vmem [shape: f32[1,4], index: 2, kind: input, shape index: {}]
  %s3 = inlined_call_operand.vmem [shape: f32[2,1,1], index: 3, kind: output, shape index: {}]
  %s4 = sld [smem:[#allocation0]]
  $region57: #{tpu_custom_call.1} parent=0
    _
  %s6 = ssub.s32 1, %s4
  %s7 = scalar_select 0, %s6, %s4
  $region1: #{tpu_custom_call.1} parent=0
    #allocation4 [shape = 'u8[16384]{0}', space=vmem, size = 0x4000, scoped, tag = 'input window, operand 0']
    #allocation5 [shape = 's32[2]{0}', space=sflag, size = 0x8, scoped, tag = 'scoped memory for tpu_custom_call.1']
    %8 = vsyncpa [#allocation5], 0
    %s9 = scalar_lea.sflag [#allocation5], 1
    %10 = vsyncpa %s9, 0
    loop: start=0, step=1, limit=4
    $region2: #{tpu_custom_call.1} parent=1 // loop_pre_header
      _
    $region3: #{tpu_custom_call.1} parent=1 // loop_header
      %s12 = sphi 0, %s16
      %p13 = scmp.ge.s32.totalorder %s12, 4
      %s19 = sphi 0, %s31
      %s20 = sphi 0, %s27
      %s21 = sphi 0, %s19
      %s22 = sphi 0, %s20
      %s23 = sphi 0, %s21
      %s24 = sphi 0, %s22
      %s36 = sphi 0, %s38
      %s39 = sphi 0, %s36
      %s40 = sphi 0, %s39
      %s56 = sphi 0, %s40
      %s60 = sphi 0, %s60
      %s62 = sphi 0, %s60
      %s63 = sphi 0, %s62
      %s77 = sphi 0, %s63
      %s81 = sphi 0, %s81
      %s83 = sphi 0, %s81
      %s84 = sphi 0, %s83
      %s98 = sphi 0, %s84
      %s104 = sphi 0, %s106
      %s107 = sphi 0, %s104
      %s108 = sphi 0, %s107
      %s124 = sphi 0, %s108
    $region4: #{tpu_custom_call.1} parent=1 // loop_header_branch
      %15 = sbr.rel (%p13) target = $region8
    $region5: #{tpu_custom_call.1} parent=1 // loop_body
      %s17 = ssub.s32 %s12, 1
      %s18 = ssub.s32 %s12, 2
      %s25 = sadd.s32 1, %s20
      %p26 = scmp.ge.s32.totalorder %s25, 1
      %s27 = scalar_select %p26, 0, %s25
      %s28 = sadd.s32 1, %s19
      %s29 = scalar_select %p26, %s28, %s19
      %p30 = scmp.ge.s32.totalorder %s29, 2
      %s31 = scalar_select %p30, 0, %s29
      %s32 = ssub.s32 %s19, %s31
      %s33 = ssub.s32 %s20, %s27
      %s34 = sor.u32 %s32, %s33
      %p35 = scmp.eq.s32.totalorder %s34, 0
      %s37 = sadd.s32 %s36, 1
      %s38 = scalar_select %p35, %s36, %s37
      %p41 = pneg %p35
      %p42 = scmp.eq.s32.totalorder %s12, 1
      %p43 = por %p41, %p42
      %p44 = scmp.ne.s32.totalorder %s36, %s39
      %p45 = scmp.eq.s32.totalorder %s12, 0
      %p46 = por %p44, %p45
      %p47 = scmp.ne.s32.totalorder %s36, %s39
      %p48 = scmp.eq.s32.totalorder %s17, 1
      %p49 = por %p47, %p48
      %p50 = scmp.ne.s32.totalorder %s39, %s40
      %p51 = scmp.eq.s32.totalorder %s17, 0
      %p52 = por %p50, %p51
      %p53 = scmp.ne.s32.totalorder %s39, %s40
      %p54 = scmp.eq.s32.totalorder %s18, 1
      %p55 = por %p53, %p54
      %p57 = scmp.ne.s32.totalorder %s40, %s56
      %p58 = scmp.eq.s32.totalorder %s18, 0
      %p59 = por %p57, %p58
      %s61 = sadd.s32 %s60, 1
      %p64 = scmp.eq.s32.totalorder %s12, 1
      %p65 = scmp.ne.s32.totalorder %s60, %s62
      %p66 = scmp.eq.s32.totalorder %s12, 0
      %p67 = por %p65, %p66
      %p68 = scmp.ne.s32.totalorder %s60, %s62
      %p69 = scmp.eq.s32.totalorder %s17, 1
      %p70 = por %p68, %p69
      %p71 = scmp.ne.s32.totalorder %s62, %s63
      %p72 = scmp.eq.s32.totalorder %s17, 0
      %p73 = por %p71, %p72
      %p74 = scmp.ne.s32.totalorder %s62, %s63
      %p75 = scmp.eq.s32.totalorder %s18, 1
      %p76 = por %p74, %p75
      %p78 = scmp.ne.s32.totalorder %s63, %s77
      %p79 = scmp.eq.s32.totalorder %s18, 0
      %p80 = por %p78, %p79
      %s82 = sadd.s32 %s81, 1
      %p85 = scmp.eq.s32.totalorder %s12, 1
      %p86 = scmp.ne.s32.totalorder %s81, %s83
      %p87 = scmp.eq.s32.totalorder %s12, 0
      %p88 = por %p86, %p87
      %p89 = scmp.ne.s32.totalorder %s81, %s83
      %p90 = scmp.eq.s32.totalorder %s17, 1
      %p91 = por %p89, %p90
      %p92 = scmp.ne.s32.totalorder %s83, %s84
      %p93 = scmp.eq.s32.totalorder %s17, 0
      %p94 = por %p92, %p93
      %p95 = scmp.ne.s32.totalorder %s83, %s84
      %p96 = scmp.eq.s32.totalorder %s18, 1
      %p97 = por %p95, %p96
      %p99 = scmp.ne.s32.totalorder %s84, %s98
      %p100 = scmp.eq.s32.totalorder %s18, 0
      %p101 = por %p99, %p100
      %s102 = ssub.s32 %s19, %s31
      %p103 = scmp.eq.s32.totalorder %s102, 0
      %s105 = sadd.s32 %s104, 1
      %s106 = scalar_select %p103, %s104, %s105
      %p109 = pneg %p103
      %p110 = scmp.eq.s32.totalorder %s12, 1
      %p111 = por %p109, %p110
      %p112 = scmp.ne.s32.totalorder %s104, %s107
      %p113 = scmp.eq.s32.totalorder %s12, 0
      %p114 = por %p112, %p113
      %p115 = scmp.ne.s32.totalorder %s104, %s107
      %p116 = scmp.eq.s32.totalorder %s17, 1
      %p117 = por %p115, %p116
      %p118 = scmp.ne.s32.totalorder %s107, %s108
      %p119 = scmp.eq.s32.totalorder %s17, 0
      %p120 = por %p118, %p119
      %p121 = scmp.ne.s32.totalorder %s107, %s108
      %p122 = scmp.eq.s32.totalorder %s18, 1
      %p123 = por %p121, %p122
      %p125 = scmp.ne.s32.totalorder %s108, %s124
      %p126 = scmp.eq.s32.totalorder %s18, 0
      %p127 = por %p125, %p126
      %p128 = scmp.le.s32.totalorder 1, %s12
      %p129 = scmp.lt.s32.totalorder %s12, 3
      %p130 = pnand %p128, %p129
      %p131 = pneg %p130
      // Predicated region
      $region9: #{tpu_custom_call.1} parent=5 // pred_check
        _
      $region10: #{tpu_custom_call.1} parent=5 // pred_check_branch
        %133 = sbr.rel (%p130) target = $region12
      $region11: #{tpu_custom_call.1} parent=5 // pred_region
        %s134 = ssub.s32 %s12, 1
        // Predicated region
        $region13: #{tpu_custom_call.1} parent=11 // pred_check
          %p135 = pneg %p73
        $region14: #{tpu_custom_call.1} parent=11 // pred_check_branch
          %137 = sbr.rel (%p135) target = $region16
        $region15: #{tpu_custom_call.1} parent=11 // pred_region
          _
        $region16: #{tpu_custom_call.1} parent=11 // pred_fallthru
          _
        // Predicated region
        $region17: #{tpu_custom_call.1} parent=11 // pred_check
          %p138 = pneg %p94
        $region18: #{tpu_custom_call.1} parent=11 // pred_check_branch
          %140 = sbr.rel (%p138) target = $region20
        $region19: #{tpu_custom_call.1} parent=11 // pred_region
          _
        $region20: #{tpu_custom_call.1} parent=11 // pred_fallthru
          _
      $region12: #{tpu_custom_call.1} parent=5 // pred_fallthru
        _
      %p141 = scmp.lt.s32.totalorder %s12, 2
      // Predicated region
      $region21: #{tpu_custom_call.1} parent=5 // pred_check
        %p142 = pneg %p141
      $region22: #{tpu_custom_call.1} parent=5 // pred_check_branch
        %144 = sbr.rel (%p142) target = $region24
      $region23: #{tpu_custom_call.1} parent=5 // pred_region
        // Predicated region
        $region25: #{tpu_custom_call.1} parent=23 // pred_check
          %p145 = pneg %p46
        $region26: #{tpu_custom_call.1} parent=23 // pred_check_branch
          %147 = sbr.rel (%p145) target = $region28
        $region27: #{tpu_custom_call.1} parent=23 // pred_region
          %s148 = sand.u32 %s36, 1
          %s149 = scalar_lea.sflag [#allocation5], %s148
          %s150 = sand.u32 %s36, 1
          %s151 = smul.addr %s150, 16
          %s152 = scalar_lea.vmem [#allocation4], %s151
          %s154 = ssub.s32 256, 256
          %155 = vsyncadd %s149, %s154
          %s156 = smul.addr %s19, 8
          %s157 = sadd.s32 %s20, %s156
          %s158 = smul.addr %s157, 32
          %s159 = scalar_lea.hbm %s0, %s158
          %s160 = sshll.u32 %s152, 4
          %s161 = int_to_ptr.vmem [resolvable:$true] %s160
          %166 = dma.hbm_to_vmem [thread:$0]  %s159, 256, %s161, %s149, 32, 32, 2
        $region28: #{tpu_custom_call.1} parent=23 // pred_fallthru
          _
      $region24: #{tpu_custom_call.1} parent=5 // pred_fallthru
        _
      %p167 = scmp.le.s32.totalorder 1, %s12
      %p168 = scmp.lt.s32.totalorder %s12, 3
      %p169 = pnand %p167, %p168
      %p170 = pneg %p169
      // Predicated region
      $region29: #{tpu_custom_call.1} parent=5 // pred_check
        _
      $region30: #{tpu_custom_call.1} parent=5 // pred_check_branch
        %172 = sbr.rel (%p169) target = $region32
      $region31: #{tpu_custom_call.1} parent=5 // pred_region
        %s173 = ssub.s32 %s12, 1
        %s174 = sand.u32 %s39, 1
        %s175 = scalar_lea.sflag [#allocation5], %s174
        %s176 = sand.u32 %s39, 1
        %s177 = smul.addr %s176, 16
        %s178 = scalar_lea.vmem [#allocation4], %s177
        // Predicated region
        $region33: #{tpu_custom_call.1} parent=31 // pred_check
          %p179 = pneg %p52
        $region34: #{tpu_custom_call.1} parent=31 // pred_check_branch
          %181 = sbr.rel (%p179) target = $region36
        $region35: #{tpu_custom_call.1} parent=31 // pred_region
          %182 = dma.done %s175, 256
        $region36: #{tpu_custom_call.1} parent=31 // pred_fallthru
          _
        %s183 = sand.u32 %s39, 1
        %s184 = scalar_lea.sflag [#allocation5], %s183
        %s185 = sand.u32 %s39, 1
        %s186 = smul.addr %s185, 16
        %s187 = scalar_lea.vmem [#allocation4], %s186
        %p188 = pneg %p52
        %p189 = pneg %p49
        %p190 = pneg %p73
        %p191 = pneg %p70
        %p192 = pneg %p94
        %p193 = pneg %p91
        %p194 = pneg %p120
        %p195 = pneg %p117
        %p196 = scmp.lt.s32.totalorder %s21, 1
        %s197 = scalar_select %p196, %s21, 1
        %s198 = scalar_lea.vmem %s3, %s197
        %p199 = scmp.lt.s32.totalorder %s21, 1
        %s200 = scalar_select %p199, %s21, 1
        %s201 = scalar_lea.vmem %s3, %s200
        %p202 = scmp.eq.s32.totalorder %s22, 0
        // Predicated region
        $region37: #{tpu_custom_call.1} parent=31 // pred_check
          %p203 = pneg %p202
        $region38: #{tpu_custom_call.1} parent=31 // pred_check_branch
          %205 = sbr.rel (%p203) target = $region40
        $region39: #{tpu_custom_call.1} parent=31 // pred_region
          %206 = vst [vmem:[#allocation2] sm:$0xff] 0.0
          %207 = vst [vmem:[#allocation3] sm:$0xff] -inf
        $region40: #{tpu_custom_call.1} parent=31 // pred_fallthru
          _
        %v208 = vld [vmem:[%s178] sm:$0x3]
        %v209 = vld [vmem:[%s178 + $0x2] sm:$0x3]
        %v210 = vld [vmem:[%s178 + $0x4] sm:$0x3]
        %v211 = vld [vmem:[%s178 + $0x6] sm:$0x3]
        %v212 = vld [vmem:[%s178 + $0x8] sm:$0x3]
        %v213 = vld [vmem:[%s178 + $0xa] sm:$0x3]
        %v214 = vld [vmem:[%s178 + $0xc] sm:$0x3]
        %v215 = vld [vmem:[%s178 + $0xe] sm:$0x3]
        %v216 = vld [vmem:[#allocation2] sm:$0xff]
        %vm217 = vcmask 1041408
        %v218 = vsel %vm217, %v208, 0.0
        %v219 = vrot.slane %v218, 4
        %v220 = vadd.f32 %v218, %v219
        %v221 = vrot.slane %v220, 2
        %v222 = vadd.f32 %v220, %v221
        %v223 = vrot.slane %v222, 1
        %v224 = vadd.f32 %v222, %v223
        %v225 = vsel %vm217, %v209, 0.0
        %v226 = vrot.slane %v225, 4
        %v227 = vadd.f32 %v225, %v226
        %v228 = vrot.slane %v227, 2
        %v229 = vadd.f32 %v227, %v228
        %v230 = vrot.slane %v229, 1
        %v231 = vadd.f32 %v229, %v230
        %v232 = vsel %vm217, %v210, 0.0
        %v233 = vrot.slane %v232, 4
        %v234 = vadd.f32 %v232, %v233
        %v235 = vrot.slane %v234, 2
        %v236 = vadd.f32 %v234, %v235
        %v237 = vrot.slane %v236, 1
        %v238 = vadd.f32 %v236, %v237
        %v239 = vsel %vm217, %v211, 0.0
        %v240 = vrot.slane %v239, 4
        %v241 = vadd.f32 %v239, %v240
        %v242 = vrot.slane %v241, 2
        %v243 = vadd.f32 %v241, %v242
        %v244 = vrot.slane %v243, 1
        %v245 = vadd.f32 %v243, %v244
        %v246 = vsel %vm217, %v212, 0.0
        %v247 = vrot.slane %v246, 4
        %v248 = vadd.f32 %v246, %v247
        %v249 = vrot.slane %v248, 2
        %v250 = vadd.f32 %v248, %v249
        %v251 = vrot.slane %v250, 1
        %v252 = vadd.f32 %v250, %v251
        %v253 = vsel %vm217, %v213, 0.0
        %v254 = vrot.slane %v253, 4
        %v255 = vadd.f32 %v253, %v254
        %v256 = vrot.slane %v255, 2
        %v257 = vadd.f32 %v255, %v256
        %v258 = vrot.slane %v257, 1
        %v259 = vadd.f32 %v257, %v258
        %v260 = vsel %vm217, %v214, 0.0
        %v261 = vrot.slane %v260, 4
        %v262 = vadd.f32 %v260, %v261
        %v263 = vrot.slane %v262, 2
        %v264 = vadd.f32 %v262, %v263
        %v265 = vrot.slane %v264, 1
        %v266 = vadd.f32 %v264, %v265
        %v267 = vsel %vm217, %v215, 0.0
        %v268 = vrot.slane %v267, 4
        %v269 = vadd.f32 %v267, %v268
        %v270 = vrot.slane %v269, 2
        %v271 = vadd.f32 %v269, %v270
        %v272 = vrot.slane %v271, 1
        %v273 = vadd.f32 %v271, %v272
        %vm282 = vcmask 1041409
        %v283 = vsel %vm282, %v231, %v224
        %vm284 = vcmask 1042434
        %v285 = vsel %vm284, %v238, %v283
        %vm286 = vcmask 1043459
        %v287 = vsel %vm286, %v245, %v285
        %vm288 = vcmask 1044484
        %v289 = vsel %vm288, %v252, %v287
        %vm290 = vcmask 1045509
        %v291 = vsel %vm290, %v259, %v289
        %vm292 = vcmask 1046534
        %v293 = vsel %vm292, %v266, %v291
        %vm294 = vcmask 1047559
        %v295 = vsel %vm294, %v273, %v293
        %v297 = vadd.f32 %v216, %v295
        %298 = vst [vmem:[#allocation2] sm:$0xff] %v297
        %v299 = vld [vmem:[#allocation3] sm:$0xff]
        %v300 = vsel %vm217, %v208, -inf
        %v301 = vrot.slane %v300, 4
        %v302 = vmax.f32 %v300, %v301
        %v303 = vrot.slane %v302, 2
        %v304 = vmax.f32 %v302, %v303
        %v305 = vrot.slane %v304, 1
        %v306 = vmax.f32 %v304, %v305
        %v307 = vsel %vm217, %v209, -inf
        %v308 = vrot.slane %v307, 4
        %v309 = vmax.f32 %v307, %v308
        %v310 = vrot.slane %v309, 2
        %v311 = vmax.f32 %v309, %v310
        %v312 = vrot.slane %v311, 1
        %v313 = vmax.f32 %v311, %v312
        %v314 = vsel %vm217, %v210, -inf
        %v315 = vrot.slane %v314, 4
        %v316 = vmax.f32 %v314, %v315
        %v317 = vrot.slane %v316, 2
        %v318 = vmax.f32 %v316, %v317
        %v319 = vrot.slane %v318, 1
        %v320 = vmax.f32 %v318, %v319
        %v321 = vsel %vm217, %v211, -inf
        %v322 = vrot.slane %v321, 4
        %v323 = vmax.f32 %v321, %v322
        %v324 = vrot.slane %v323, 2
        %v325 = vmax.f32 %v323, %v324
        %v326 = vrot.slane %v325, 1
        %v327 = vmax.f32 %v325, %v326
        %v328 = vsel %vm217, %v212, -inf
        %v329 = vrot.slane %v328, 4
        %v330 = vmax.f32 %v328, %v329
        %v331 = vrot.slane %v330, 2
        %v332 = vmax.f32 %v330, %v331
        %v333 = vrot.slane %v332, 1
        %v334 = vmax.f32 %v332, %v333
        %v335 = vsel %vm217, %v213, -inf
        %v336 = vrot.slane %v335, 4
        %v337 = vmax.f32 %v335, %v336
        %v338 = vrot.slane %v337, 2
        %v339 = vmax.f32 %v337, %v338
        %v340 = vrot.slane %v339, 1
        %v341 = vmax.f32 %v339, %v340
        %v342 = vsel %vm217, %v214, -inf
        %v343 = vrot.slane %v342, 4
        %v344 = vmax.f32 %v342, %v343
        %v345 = vrot.slane %v344, 2
        %v346 = vmax.f32 %v344, %v345
        %v347 = vrot.slane %v346, 1
        %v348 = vmax.f32 %v346, %v347
        %v349 = vsel %vm217, %v215, -inf
        %v350 = vrot.slane %v349, 4
        %v351 = vmax.f32 %v349, %v350
        %v352 = vrot.slane %v351, 2
        %v353 = vmax.f32 %v351, %v352
        %v354 = vrot.slane %v353, 1
        %v355 = vmax.f32 %v353, %v354
        %v364 = vsel %vm282, %v313, %v306
        %v365 = vsel %vm284, %v320, %v364
        %v366 = vsel %vm286, %v327, %v365
        %v367 = vsel %vm288, %v334, %v366
        %v368 = vsel %vm290, %v341, %v367
        %v369 = vsel %vm292, %v348, %v368
        %v370 = vsel %vm294, %v355, %v369
        %v372 = vmax.f32 %v299, %v370
        %373 = vst [vmem:[#allocation3] sm:$0xff] %v372
        // Predicated region
        $region41: #{tpu_custom_call.1} parent=31 // pred_check
          %p374 = pneg %p202
        $region42: #{tpu_custom_call.1} parent=31 // pred_check_branch
          %376 = sbr.rel (%p374) target = $region44
        $region43: #{tpu_custom_call.1} parent=31 // pred_region
          %v377 = vld [vmem:[#allocation2] sm:$0xff]
          %378 = vadd.xlane.f32.xlu0 %v377
          %v379 = vpop.xlane.xlu0 %378
          %v380 = vmul.f32 %v379, 0.00390625
          %v381 = vld [vmem:[#allocation3] sm:$0xff]
          %382 = vmax.xlane.f32.xlu0 %v381
          %v383 = vpop.xlane.xlu0 %382
          %v384 = vld [vmem:[%s1] sm:$0xff]
          %v385 = vld [vmem:[%s2] sm:$0x1]
          %v386 = vmul.f32 %v384, %v380
          %vm387 = vcmask 31744
          %v388 = vsel %vm387, %v386, 0.0
          %v389 = vrot.slane %v388, 4
          %v390 = vadd.f32 %v388, %v389
          %v391 = vrot.slane %v390, 2
          %v392 = vadd.f32 %v390, %v391
          %v393 = vrot.slane %v392, 1
          %v394 = vadd.f32 %v392, %v393
          %v395 = vmax.f32 %v394, 0.0
          %v396 = vmul.f32 %v384, %v383
          %v397 = vsel %vm387, %v396, 0.0
          %v398 = vrot.slane %v397, 4
          %v399 = vadd.f32 %v397, %v398
          %v400 = vrot.slane %v399, 2
          %v401 = vadd.f32 %v399, %v400
          %v402 = vrot.slane %v401, 1
          %v403 = vadd.f32 %v401, %v402
          %v404 = vmax.f32 %v403, 0.0
          %v405 = vmul.f32 %v395, %v385
          %vm406 = vcmask 24576
          %v407 = vsel %vm406, %v405, 0.0
          %408 = vadd.xlane.f32.xlu0 %v407
          %v409 = vpop.xlane.xlu0 %408
          %v410 = vmul.f32 %v404, %v385
          %v411 = vsel %vm406, %v410, 0.0
          %412 = vadd.xlane.f32.xlu0 %v411
          %v413 = vpop.xlane.xlu0 %412
          %v414 = vadd.f32 %v409, %v413
          %v415 = vxor.u32 %v414, 2147483648
          %v416 = vmul.f32 %v415, 1.442695
          %v417 = vpow.pop %v416
          %v418 = vadd.f32 %v417, 1.0
          %v419 = vrcp.pop %v418
          %v420 = vmul.f32 1.0, %v419
          %vm421 = vcmask 0
          %422 = vst.msk [vmem:[%s201] sm:$0x1] %vm421, %v420
        $region44: #{tpu_custom_call.1} parent=31 // pred_fallthru
          _
        %p423 = scmp.lt.s32.totalorder %s21, 1
        %s424 = scalar_select %p423, %s21, 1
        %s425 = scalar_lea.vmem %s3, %s424
        // Predicated region
        $region45: #{tpu_custom_call.1} parent=31 // pred_check
          %p426 = pneg %p117
        $region46: #{tpu_custom_call.1} parent=31 // pred_check_branch
          %428 = sbr.rel (%p426) target = $region48
        $region47: #{tpu_custom_call.1} parent=31 // pred_region
          _
        $region48: #{tpu_custom_call.1} parent=31 // pred_fallthru
          _
      $region32: #{tpu_custom_call.1} parent=5 // pred_fallthru
        _
      %p429 = scmp.le.s32.totalorder 2, %s12
      // Predicated region
      $region49: #{tpu_custom_call.1} parent=5 // pred_check
        %p430 = pneg %p429
      $region50: #{tpu_custom_call.1} parent=5 // pred_check_branch
        %432 = sbr.rel (%p430) target = $region52
      $region51: #{tpu_custom_call.1} parent=5 // pred_region
        %s433 = ssub.s32 %s12, 2
        // Predicated region
        $region53: #{tpu_custom_call.1} parent=51 // pred_check
          %p434 = pneg %p123
        $region54: #{tpu_custom_call.1} parent=51 // pred_check_branch
          %436 = sbr.rel (%p434) target = $region56
        $region55: #{tpu_custom_call.1} parent=51 // pred_region
          %p437 = scmp.lt.s32.totalorder %s23, 1
          %s438 = scalar_select %p437, %s23, 1
          %s439 = scalar_lea.vmem %s3, %s438
        $region56: #{tpu_custom_call.1} parent=51 // pred_fallthru
          _
      $region52: #{tpu_custom_call.1} parent=5 // pred_fallthru
        _
    $region6: #{tpu_custom_call.1} parent=1 // loop_footer
      %s16 = sadd.s32 1, %s12
    $region7: #{tpu_custom_call.1} parent=1 // loop_footer_branch
      %11 = sbr.rel target = $region3
    $region8: #{tpu_custom_call.1} parent=1 // loop_exit
      _
    %440 = vsyncpa [#allocation5], 1
    %s441 = scalar_lea.sflag [#allocation5], 1
    %442 = vsyncpa %s441, 1

</llo_original>
